<compile_context>
chip_gen: v7x
topology: tpu7x:2x2x1
jax: 0.10.0
libtpu: 0.0.40
codegen_flags: <defaults>
</compile_context>

<pallas_src>
import functools

import jax
import jax.numpy as jnp
from jax import lax
from jax.experimental import pallas as pl
from jax.experimental.pallas import tpu as pltpu


def _round_up(x: int, m: int) -> int:
    return ((x + m - 1) // m) * m


def _vq_kernel(x_ref, et_ref, q_ref, sse_ref, *, hw):
    """Nearest-codebook lookup for one (batch, lane-tile) block.

    x_ref  : (C, T)      input pixels, C-major, T lanes (possibly padded)
    et_ref : (C, K)      codebook transposed (full, tiny)
    q_ref  : (C, T)      quantized output (nearest embedding per lane)
    sse_ref: (8, 128)    per-tile partial sum of squared error (broadcast)
    hw     : int (static) number of valid lanes along the full H*W axis
    """
    t_idx = pl.program_id(1)

    x = x_ref[...].astype(jnp.float32)     # (C, T)
    et = et_ref[...].astype(jnp.float32)   # (C, K)
    C, T = x.shape
    K = et.shape[1]

    def dist(k):
        ek = et[:, k:k + 1]                                  # (C, 1)
        d = x - ek                                           # (C, T) VPU
        return jnp.sum(d * d, axis=0, keepdims=True)         # (1, T)

    # Running min over the (small, static) number of codes.  Strict '<' keeps
    # the first occurrence on exact ties, matching torch.argmin semantics.
    best_d = dist(0)                                         # (1, T)
    best_q = jnp.broadcast_to(et[:, 0:1], (C, T))            # (C, T)
    for k in range(1, K):
        d_k = dist(k)
        better = d_k < best_d                                # (1, T)
        best_d = jnp.where(better, d_k, best_d)
        best_q = jnp.where(better, et[:, k:k + 1], best_q)   # (C, T)

    # Lane-dense, unmasked store (T is a multiple of 128 or the full axis).
    q_ref[...] = best_q.astype(q_ref.dtype)

    # Squared-error partial sum for this tile; mask out padded lanes.
    lane = lax.broadcasted_iota(jnp.int32, (1, T), 1)
    valid = (t_idx * T + lane) < hw                          # (1, T)
    diff = jnp.where(valid, x - best_q, 0.0)                 # (C, T)
    sse = jnp.sum(diff * diff)                               # scalar
    sse_ref[...] = jnp.broadcast_to(sse, sse_ref.shape)


@functools.partial(jax.jit, static_argnames=("t_hw",))
def quantizer_forward(x_nchw, codebook, *, t_hw=None):
    """Forward pass matching Quantizer.forward (values only; detach /
    straight-through estimator only affect gradients).

    x_nchw:   (B, C, H, W) float32
    codebook: (K, C)       float32   (nn.Embedding weight)
    Returns (quantized, loss_dict, quantizer_loss, min_index) like the module.
    """
    B, C, H, W = x_nchw.shape
    K, Ce = codebook.shape
    assert Ce == C
    HW = H * W

    # Lane tile along H*W: as large as reasonable, multiple of 128 (or full).
    if t_hw is None:
        t_hw = min(_round_up(HW, 128), 2048)
    t_hw = _round_up(t_hw, 128)
    hw_pad = _round_up(HW, t_hw)
    n_t = hw_pad // t_hw

    # NCHW -> (B, C, HW): pure reshape, no transpose.  Pad lanes if needed.
    x3 = x_nchw.reshape(B, C, HW)
    if hw_pad != HW:
        x3 = jnp.pad(x3, ((0, 0), (0, 0), (0, hw_pad - HW)))
    et = codebook.T  # (C, K) tiny, re-fetched per step (negligible)

    q3, sse_p = pl.pallas_call(
        functools.partial(_vq_kernel, hw=HW),
        out_shape=(
            jax.ShapeDtypeStruct((B, C, hw_pad), x3.dtype),
            jax.ShapeDtypeStruct((B, n_t, 8, 128), jnp.float32),
        ),
        grid_spec=pltpu.PrefetchScalarGridSpec(
            num_scalar_prefetch=0,
            grid=(B, n_t),
            in_specs=[
                pl.BlockSpec((None, C, t_hw), lambda b, i: (b, 0, i)),  # x tile
                pl.BlockSpec((C, K), lambda b, i: (0, 0)),              # codebook^T
            ],
            out_specs=[
                pl.BlockSpec((None, C, t_hw), lambda b, i: (b, 0, i)),       # q tile
                pl.BlockSpec((None, None, 8, 128), lambda b, i: (b, i, 0, 0)),  # SSE part
            ],
        ),
        compiler_params=pltpu.CompilerParams(
            dimension_semantics=("parallel", "parallel"),
        ),
    )(x3, et)

    # Drop lane padding; output is already NCHW -> no transpose needed.
    quantized = q3[:, :, :HW].reshape(B, C, H, W)

    # Losses: commitment and codebook losses are numerically identical in the
    # forward pass (detach only changes gradients).
    sse = jnp.sum(sse_p[:, :, 0, 0])
    mse = sse / jnp.float32(B * HW * C)
    beta = jnp.float32(0.2)
    comitment_loss = mse
    codebook_loss = mse
    quantizer_loss = beta * comitment_loss + codebook_loss

    # Module returns min_index = nhwc_values.reshape(B, C, H, W): a raw memory
    # reinterpretation of the NHWC quantized values (NOT integer indices).
    # Reproduce exactly.  # TODO(synk): emit int32 code indices as an extra
    # kernel output if actual indices are ever wanted.
    q_nhwc = jnp.transpose(quantized, (0, 2, 3, 1))
    min_index = q_nhwc.reshape(B, C, H, W)

    return (
        quantized,
        {"cookbook_loss": codebook_loss, "comitment_loss": comitment_loss},
        quantizer_loss,
        min_index,
    )


if __name__ == "__main__":
    # Config implied by the module: num_embeddings (K), embedding_dim (== C).
    num_embeddings = 8
    embedding_dim = 4
    B, C, H, W = 2, embedding_dim, 16, 16

    key = jax.random.PRNGKey(0)
    kx, ke = jax.random.split(key)
    x = jax.random.normal(kx, (B, C, H, W), dtype=jnp.float32)
    # nn.Embedding weight init: uniform(-1/K, 1/K), shape (K, C).
    codebook = jax.random.uniform(
        ke, (num_embeddings, embedding_dim), dtype=jnp.float32,
        minval=-1.0 / num_embeddings, maxval=1.0 / num_embeddings)

    quantized, loss_dict, quantizer_loss, min_index = quantizer_forward(x, codebook)
    jax.block_until_ready((quantized, loss_dict, quantizer_loss, min_index))

    # Pure-JAX reference (same semantics as the PyTorch module's forward).
    x_rows = jnp.transpose(x, (0, 2, 3, 1)).reshape(-1, C)
    d_ref = jnp.sum((x_rows[:, None, :] - codebook[None, :, :]) ** 2, axis=-1)
    idx_ref = jnp.argmin(d_ref, axis=-1)
    q_rows = codebook[idx_ref]
    quantized_ref = jnp.transpose(q_rows.reshape(B, H, W, C), (0, 3, 1, 2))
    mse_ref = jnp.mean((x_rows - q_rows) ** 2)
    loss_ref = jnp.float32(0.2) * mse_ref + mse_ref
    min_index_ref = q_rows.reshape(B, H, W, C).reshape(B, C, H, W)

    assert quantized.shape == (B, C, H, W)
    assert min_index.shape == (B, C, H, W)
    assert quantizer_loss.shape == ()
    assert bool(jnp.allclose(quantized, quantized_ref))
    assert bool(jnp.allclose(min_index, min_index_ref))
    assert bool(jnp.allclose(quantizer_loss, loss_ref, rtol=1e-5, atol=1e-6))

    print("KERNEL_OK")
</pallas_src>

<mosaic_0001>
module attributes {stable_mosaic.version = 11 : i64} {
  func.func @_vq_kernel(%arg0: i32, %arg1: i32, %arg2: memref<1x4x256xf32, #tpu.memory_space<vmem>>, %arg3: memref<4x8xf32, #tpu.memory_space<vmem>>, %arg4: memref<1x4x256xf32, #tpu.memory_space<vmem>>, %arg5: memref<1x1x8x128xf32, #tpu.memory_space<vmem>>) attributes {dimension_semantics = [#tpu.dimension_semantics<parallel>, #tpu.dimension_semantics<parallel>], iteration_bounds = array<i64: 2, 1>, scalar_prefetch = 0 : i64, scratch_operands = 0 : i64, tpu.core_type = #tpu.core_type<tc>, window_params = [{transform_indices = @transform_0, window_bounds = array<i64: 1, 4, 256>}, {pipeline_mode = #tpu.pipeline_mode<synchronous>, transform_indices = @transform_1, window_bounds = array<i64: 4, 8>}, {transform_indices = @transform_2, window_bounds = array<i64: 1, 4, 256>}, {transform_indices = @transform_3, window_bounds = array<i64: 1, 1, 8, 128>}]} {
    %c0 = arith.constant 0 : index
    %c0_0 = arith.constant 0 : index
    %c0_1 = arith.constant 0 : index
    %0 = vector.load %arg2[%c0, %c0_0, %c0_1] : memref<1x4x256xf32, #tpu.memory_space<vmem>>, vector<1x4x256xf32>
    %1 = vector.shape_cast %0 : vector<1x4x256xf32> to vector<4x256xf32>
    %c0_2 = arith.constant 0 : index
    %c0_3 = arith.constant 0 : index
    %2 = vector.load %arg3[%c0_2, %c0_3] : memref<4x8xf32, #tpu.memory_space<vmem>>, vector<4x8xf32>
    %3 = vector.extract_strided_slice %2 {offsets = [0, 0], sizes = [4, 1], strides = [1, 1]} : vector<4x8xf32> to vector<4x1xf32>
    %4 = vector.broadcast %3 : vector<4x1xf32> to vector<4x256xf32>
    %5 = arith.subf %1, %4 : vector<4x256xf32>
    %6 = arith.mulf %5, %5 : vector<4x256xf32>
    %cst = arith.constant dense<0.000000e+00> : vector<256xf32>
    %7 = vector.multi_reduction <add>, %6, %cst [0] : vector<4x256xf32> to vector<256xf32>
    %8 = vector.shape_cast %7 : vector<256xf32> to vector<1x256xf32>
    %9 = vector.extract_strided_slice %2 {offsets = [0, 0], sizes = [4, 1], strides = [1, 1]} : vector<4x8xf32> to vector<4x1xf32>
    %10 = vector.shape_cast %9 : vector<4x1xf32> to vector<4x1xf32>
    %11 = vector.broadcast %10 : vector<4x1xf32> to vector<4x256xf32>
    %12 = vector.extract_strided_slice %2 {offsets = [0, 1], sizes = [4, 1], strides = [1, 1]} : vector<4x8xf32> to vector<4x1xf32>
    %13 = vector.broadcast %12 : vector<4x1xf32> to vector<4x256xf32>
    %14 = arith.subf %1, %13 : vector<4x256xf32>
    %15 = arith.mulf %14, %14 : vector<4x256xf32>
    %cst_4 = arith.constant dense<0.000000e+00> : vector<256xf32>
    %16 = vector.multi_reduction <add>, %15, %cst_4 [0] : vector<4x256xf32> to vector<256xf32>
    %17 = vector.shape_cast %16 : vector<256xf32> to vector<1x256xf32>
    %18 = arith.cmpf olt, %17, %8 : vector<1x256xf32>
    %19 = arith.select %18, %17, %8 : vector<1x256xi1>, vector<1x256xf32>
    %20 = vector.extract_strided_slice %2 {offsets = [0, 1], sizes = [4, 1], strides = [1, 1]} : vector<4x8xf32> to vector<4x1xf32>
    %21 = vector.shape_cast %18 : vector<1x256xi1> to vector<1x256xi1>
    %22 = vector.broadcast %21 : vector<1x256xi1> to vector<4x256xi1>
    %23 = vector.shape_cast %20 : vector<4x1xf32> to vector<4x1xf32>
    %24 = vector.broadcast %23 : vector<4x1xf32> to vector<4x256xf32>
    %25 = arith.select %22, %24, %11 : vector<4x256xi1>, vector<4x256xf32>
    %26 = vector.extract_strided_slice %2 {offsets = [0, 2], sizes = [4, 1], strides = [1, 1]} : vector<4x8xf32> to vector<4x1xf32>
    %27 = vector.broadcast %26 : vector<4x1xf32> to vector<4x256xf32>
    %28 = arith.subf %1, %27 : vector<4x256xf32>
    %29 = arith.mulf %28, %28 : vector<4x256xf32>
    %cst_5 = arith.constant dense<0.000000e+00> : vector<256xf32>
    %30 = vector.multi_reduction <add>, %29, %cst_5 [0] : vector<4x256xf32> to vector<256xf32>
    %31 = vector.shape_cast %30 : vector<256xf32> to vector<1x256xf32>
    %32 = arith.cmpf olt, %31, %19 : vector<1x256xf32>
    %33 = arith.select %32, %31, %19 : vector<1x256xi1>, vector<1x256xf32>
    %34 = vector.extract_strided_slice %2 {offsets = [0, 2], sizes = [4, 1], strides = [1, 1]} : vector<4x8xf32> to vector<4x1xf32>
    %35 = vector.shape_cast %32 : vector<1x256xi1> to vector<1x256xi1>
    %36 = vector.broadcast %35 : vector<1x256xi1> to vector<4x256xi1>
    %37 = vector.shape_cast %34 : vector<4x1xf32> to vector<4x1xf32>
    %38 = vector.broadcast %37 : vector<4x1xf32> to vector<4x256xf32>
    %39 = arith.select %36, %38, %25 : vector<4x256xi1>, vector<4x256xf32>
    %40 = vector.extract_strided_slice %2 {offsets = [0, 3], sizes = [4, 1], strides = [1, 1]} : vector<4x8xf32> to vector<4x1xf32>
    %41 = vector.broadcast %40 : vector<4x1xf32> to vector<4x256xf32>
    %42 = arith.subf %1, %41 : vector<4x256xf32>
    %43 = arith.mulf %42, %42 : vector<4x256xf32>
    %cst_6 = arith.constant dense<0.000000e+00> : vector<256xf32>
    %44 = vector.multi_reduction <add>, %43, %cst_6 [0] : vector<4x256xf32> to vector<256xf32>
    %45 = vector.shape_cast %44 : vector<256xf32> to vector<1x256xf32>
    %46 = arith.cmpf olt, %45, %33 : vector<1x256xf32>
    %47 = arith.select %46, %45, %33 : vector<1x256xi1>, vector<1x256xf32>
    %48 = vector.extract_strided_slice %2 {offsets = [0, 3], sizes = [4, 1], strides = [1, 1]} : vector<4x8xf32> to vector<4x1xf32>
    %49 = vector.shape_cast %46 : vector<1x256xi1> to vector<1x256xi1>
    %50 = vector.broadcast %49 : vector<1x256xi1> to vector<4x256xi1>
    %51 = vector.shape_cast %48 : vector<4x1xf32> to vector<4x1xf32>
    %52 = vector.broadcast %51 : vector<4x1xf32> to vector<4x256xf32>
    %53 = arith.select %50, %52, %39 : vector<4x256xi1>, vector<4x256xf32>
    %54 = vector.extract_strided_slice %2 {offsets = [0, 4], sizes = [4, 1], strides = [1, 1]} : vector<4x8xf32> to vector<4x1xf32>
    %55 = vector.broadcast %54 : vector<4x1xf32> to vector<4x256xf32>
    %56 = arith.subf %1, %55 : vector<4x256xf32>
    %57 = arith.mulf %56, %56 : vector<4x256xf32>
    %cst_7 = arith.constant dense<0.000000e+00> : vector<256xf32>
    %58 = vector.multi_reduction <add>, %57, %cst_7 [0] : vector<4x256xf32> to vector<256xf32>
    %59 = vector.shape_cast %58 : vector<256xf32> to vector<1x256xf32>
    %60 = arith.cmpf olt, %59, %47 : vector<1x256xf32>
    %61 = arith.select %60, %59, %47 : vector<1x256xi1>, vector<1x256xf32>
    %62 = vector.extract_strided_slice %2 {offsets = [0, 4], sizes = [4, 1], strides = [1, 1]} : vector<4x8xf32> to vector<4x1xf32>
    %63 = vector.shape_cast %60 : vector<1x256xi1> to vector<1x256xi1>
    %64 = vector.broadcast %63 : vector<1x256xi1> to vector<4x256xi1>
    %65 = vector.shape_cast %62 : vector<4x1xf32> to vector<4x1xf32>
    %66 = vector.broadcast %65 : vector<4x1xf32> to vector<4x256xf32>
    %67 = arith.select %64, %66, %53 : vector<4x256xi1>, vector<4x256xf32>
    %68 = vector.extract_strided_slice %2 {offsets = [0, 5], sizes = [4, 1], strides = [1, 1]} : vector<4x8xf32> to vector<4x1xf32>
    %69 = vector.broadcast %68 : vector<4x1xf32> to vector<4x256xf32>
    %70 = arith.subf %1, %69 : vector<4x256xf32>
    %71 = arith.mulf %70, %70 : vector<4x256xf32>
    %cst_8 = arith.constant dense<0.000000e+00> : vector<256xf32>
    %72 = vector.multi_reduction <add>, %71, %cst_8 [0] : vector<4x256xf32> to vector<256xf32>
    %73 = vector.shape_cast %72 : vector<256xf32> to vector<1x256xf32>
    %74 = arith.cmpf olt, %73, %61 : vector<1x256xf32>
    %75 = arith.select %74, %73, %61 : vector<1x256xi1>, vector<1x256xf32>
    %76 = vector.extract_strided_slice %2 {offsets = [0, 5], sizes = [4, 1], strides = [1, 1]} : vector<4x8xf32> to vector<4x1xf32>
    %77 = vector.shape_cast %74 : vector<1x256xi1> to vector<1x256xi1>
    %78 = vector.broadcast %77 : vector<1x256xi1> to vector<4x256xi1>
    %79 = vector.shape_cast %76 : vector<4x1xf32> to vector<4x1xf32>
    %80 = vector.broadcast %79 : vector<4x1xf32> to vector<4x256xf32>
    %81 = arith.select %78, %80, %67 : vector<4x256xi1>, vector<4x256xf32>
    %82 = vector.extract_strided_slice %2 {offsets = [0, 6], sizes = [4, 1], strides = [1, 1]} : vector<4x8xf32> to vector<4x1xf32>
    %83 = vector.broadcast %82 : vector<4x1xf32> to vector<4x256xf32>
    %84 = arith.subf %1, %83 : vector<4x256xf32>
    %85 = arith.mulf %84, %84 : vector<4x256xf32>
    %cst_9 = arith.constant dense<0.000000e+00> : vector<256xf32>
    %86 = vector.multi_reduction <add>, %85, %cst_9 [0] : vector<4x256xf32> to vector<256xf32>
    %87 = vector.shape_cast %86 : vector<256xf32> to vector<1x256xf32>
    %88 = arith.cmpf olt, %87, %75 : vector<1x256xf32>
    %89 = arith.select %88, %87, %75 : vector<1x256xi1>, vector<1x256xf32>
    %90 = vector.extract_strided_slice %2 {offsets = [0, 6], sizes = [4, 1], strides = [1, 1]} : vector<4x8xf32> to vector<4x1xf32>
    %91 = vector.shape_cast %88 : vector<1x256xi1> to vector<1x256xi1>
    %92 = vector.broadcast %91 : vector<1x256xi1> to vector<4x256xi1>
    %93 = vector.shape_cast %90 : vector<4x1xf32> to vector<4x1xf32>
    %94 = vector.broadcast %93 : vector<4x1xf32> to vector<4x256xf32>
    %95 = arith.select %92, %94, %81 : vector<4x256xi1>, vector<4x256xf32>
    %96 = vector.extract_strided_slice %2 {offsets = [0, 7], sizes = [4, 1], strides = [1, 1]} : vector<4x8xf32> to vector<4x1xf32>
    %97 = vector.broadcast %96 : vector<4x1xf32> to vector<4x256xf32>
    %98 = arith.subf %1, %97 : vector<4x256xf32>
    %99 = arith.mulf %98, %98 : vector<4x256xf32>
    %cst_10 = arith.constant dense<0.000000e+00> : vector<256xf32>
    %100 = vector.multi_reduction <add>, %99, %cst_10 [0] : vector<4x256xf32> to vector<256xf32>
    %101 = vector.shape_cast %100 : vector<256xf32> to vector<1x256xf32>
    %102 = arith.cmpf olt, %101, %89 : vector<1x256xf32>
    %103 = vector.extract_strided_slice %2 {offsets = [0, 7], sizes = [4, 1], strides = [1, 1]} : vector<4x8xf32> to vector<4x1xf32>
    %104 = vector.shape_cast %102 : vector<1x256xi1> to vector<1x256xi1>
    %105 = vector.broadcast %104 : vector<1x256xi1> to vector<4x256xi1>
    %106 = vector.shape_cast %103 : vector<4x1xf32> to vector<4x1xf32>
    %107 = vector.broadcast %106 : vector<4x1xf32> to vector<4x256xf32>
    %108 = arith.select %105, %107, %95 : vector<4x256xi1>, vector<4x256xf32>
    %c0_11 = arith.constant 0 : index
    %c0_12 = arith.constant 0 : index
    %c0_13 = arith.constant 0 : index
    %109 = vector.load %arg4[%c0_11, %c0_12, %c0_13] : memref<1x4x256xf32, #tpu.memory_space<vmem>>, vector<1x4x256xf32>
    %110 = vector.shape_cast %109 : vector<1x4x256xf32> to vector<4x256xf32>
    %111 = vector.shape_cast %108 : vector<4x256xf32> to vector<1x4x256xf32>
    tpu.vector_store %arg4[%c0_11, %c0_12, %c0_13], %111 {strides = array<i32>} : memref<1x4x256xf32, #tpu.memory_space<vmem>>, vector<1x4x256xf32>,
    %112 = tpu.iota {dimensions = array<i32: 1>} : vector<1x256xi32>
    %c256_i32 = arith.constant 256 : i32
    %113 = arith.muli %arg1, %c256_i32 : i32
    %114 = vector.broadcast %113 : i32 to vector<1x256xi32>
    %115 = arith.addi %114, %112 : vector<1x256xi32>
    %c256_i32_14 = arith.constant 256 : i32
    %116 = vector.broadcast %c256_i32_14 : i32 to vector<1x256xi32>
    %117 = arith.cmpi slt, %115, %116 : vector<1x256xi32>
    %118 = arith.subf %1, %108 : vector<4x256xf32>
    %cst_15 = arith.constant 0.000000e+00 : f32
    %119 = vector.shape_cast %117 : vector<1x256xi1> to vector<1x256xi1>
    %120 = vector.broadcast %119 : vector<1x256xi1> to vector<4x256xi1>
    %121 = vector.broadcast %cst_15 : f32 to vector<4x256xf32>
    %122 = arith.select %120, %118, %121 : vector<4x256xi1>, vector<4x256xf32>
    %123 = arith.mulf %122, %122 : vector<4x256xf32>
    %124 = vector.shape_cast %123 : vector<4x256xf32> to vector<1x4x256xf32>
    %cst_16 = arith.constant dense<0.000000e+00> : vector<1xf32>
    %125 = vector.multi_reduction <add>, %124, %cst_16 [1, 2] : vector<1x4x256xf32> to vector<1xf32>
    %126 = vector.shape_cast %125 : vector<1xf32> to vector<1x1x1xf32>
    %127 = vector.extract %126[0, 0, 0] : f32 from vector<1x1x1xf32>
    %128 = vector.broadcast %127 : f32 to vector<8x128xf32>
    %c0_17 = arith.constant 0 : index
    %c0_18 = arith.constant 0 : index
    %c0_19 = arith.constant 0 : index
    %c0_20 = arith.constant 0 : index
    %129 = vector.load %arg5[%c0_17, %c0_18, %c0_19, %c0_20] : memref<1x1x8x128xf32, #tpu.memory_space<vmem>>, vector<1x1x8x128xf32>
    %130 = vector.shape_cast %129 : vector<1x1x8x128xf32> to vector<8x128xf32>
    %131 = vector.shape_cast %128 : vector<8x128xf32> to vector<1x1x8x128xf32>
    tpu.vector_store %arg5[%c0_17, %c0_18, %c0_19, %c0_20], %131 {strides = array<i32>} : memref<1x1x8x128xf32, #tpu.memory_space<vmem>>, vector<1x1x8x128xf32>,
    return
  }
  func.func @transform_0(%arg0: i32, %arg1: i32) -> (i32, i32, i32) {
    %c0_i32 = arith.constant 0 : i32
    %c0_i32_0 = arith.constant 0 : i32
    return %arg0, %c0_i32, %arg1 : i32, i32, i32
  }
  func.func @transform_1(%arg0: i32, %arg1: i32) -> (i32, i32) {
    %c0_i32 = arith.constant 0 : i32
    %c0_i32_0 = arith.constant 0 : i32
    %c0_i32_1 = arith.constant 0 : i32
    return %c0_i32, %c0_i32_0 : i32, i32
  }
  func.func @transform_2(%arg0: i32, %arg1: i32) -> (i32, i32, i32) {
    %c0_i32 = arith.constant 0 : i32
    %c0_i32_0 = arith.constant 0 : i32
    return %arg0, %c0_i32, %arg1 : i32, i32, i32
  }
  func.func @transform_3(%arg0: i32, %arg1: i32) -> (i32, i32, i32, i32) {
    %c0_i32 = arith.constant 0 : i32
    %c0_i32_0 = arith.constant 0 : i32
    %c0_i32_1 = arith.constant 0 : i32
    return %arg0, %arg1, %c0_i32, %c0_i32_0 : i32, i32, i32, i32
  }
}

</mosaic_0001>

<llo_original>
// kernel: quantizer_forward.1
$region0: #{quantizer_forward.1}
  #allocation0 [shape = 'u32[]', space=smem, size = 0x4, offset = 0x4, fixed_abs, tag = 'smem constant byte address 0x4 - core index']
  #allocation1 [shape = 'u32[144,128]{1,0:T(1,128)}', space=vmem, size = 0x12000, scoped, tag = 'internal scratch']
  %s0 = inlined_call_operand.vmem [shape: f32[2,4,256], index: 0, kind: input, shape index: {}]
  %s1 = inlined_call_operand.vmem [shape: f32[4,8], index: 1, kind: input, shape index: {}]
  %s2 = inlined_call_operand.vmem [shape: f32[2,4,256], index: 2, kind: output, shape index: {0}]
  %s3 = inlined_call_operand.vmem [shape: f32[2,1,8,128], index: 3, kind: output, shape index: {1}]
  %4 = xla_tuple %s2, %s3
  %s5 = sld [smem:[#allocation0]]
  $region49: #{quantizer_forward.1} parent=0
    _
  %s7 = ssub.s32 1, %s5
  %s8 = scalar_select 0, %s7, %s5
  loop: start=0, step=1, limit=4
  $region2: #{quantizer_forward.1} parent=0 // loop_pre_header
    _
  $region3: #{quantizer_forward.1} parent=0 // loop_header
    %s10 = sphi 0, %s14
    %p11 = scmp.ge.s32.totalorder %s10, 4
    %s17 = sphi 0, %s29
    %s18 = sphi 0, %s25
    %s19 = sphi 0, %s17
    %s20 = sphi 0, %s18
    %s21 = sphi 0, %s19
    %s22 = sphi 0, %s20
    %s34 = sphi 0, %s36
    %s37 = sphi 0, %s34
    %s38 = sphi 0, %s37
    %s54 = sphi 0, %s38
    %s58 = sphi 0, %s58
    %s60 = sphi 0, %s58
    %s61 = sphi 0, %s60
    %s75 = sphi 0, %s61
    %s83 = sphi 0, %s85
    %s86 = sphi 0, %s83
    %s87 = sphi 0, %s86
    %s103 = sphi 0, %s87
    %s111 = sphi 0, %s113
    %s114 = sphi 0, %s111
    %s115 = sphi 0, %s114
    %s131 = sphi 0, %s115
  $region4: #{quantizer_forward.1} parent=0 // loop_header_branch
    %13 = sbr.rel (%p11) target = $region8
  $region5: #{quantizer_forward.1} parent=0 // loop_body
    %s15 = ssub.s32 %s10, 1
    %s16 = ssub.s32 %s10, 2
    %s23 = sadd.s32 1, %s18
    %p24 = scmp.ge.s32.totalorder %s23, 1
    %s25 = scalar_select %p24, 0, %s23
    %s26 = sadd.s32 1, %s17
    %s27 = scalar_select %p24, %s26, %s17
    %p28 = scmp.ge.s32.totalorder %s27, 2
    %s29 = scalar_select %p28, 0, %s27
    %s30 = ssub.s32 %s17, %s29
    %s31 = ssub.s32 %s18, %s25
    %s32 = sor.u32 %s30, %s31
    %p33 = scmp.eq.s32.totalorder %s32, 0
    %s35 = sadd.s32 %s34, 1
    %s36 = scalar_select %p33, %s34, %s35
    %p39 = pneg %p33
    %p40 = scmp.eq.s32.totalorder %s10, 1
    %p41 = por %p39, %p40
    %p42 = scmp.ne.s32.totalorder %s34, %s37
    %p43 = scmp.eq.s32.totalorder %s10, 0
    %p44 = por %p42, %p43
    %p45 = scmp.ne.s32.totalorder %s34, %s37
    %p46 = scmp.eq.s32.totalorder %s15, 1
    %p47 = por %p45, %p46
    %p48 = scmp.ne.s32.totalorder %s37, %s38
    %p49 = scmp.eq.s32.totalorder %s15, 0
    %p50 = por %p48, %p49
    %p51 = scmp.ne.s32.totalorder %s37, %s38
    %p52 = scmp.eq.s32.totalorder %s16, 1
    %p53 = por %p51, %p52
    %p55 = scmp.ne.s32.totalorder %s38, %s54
    %p56 = scmp.eq.s32.totalorder %s16, 0
    %p57 = por %p55, %p56
    %s59 = sadd.s32 %s58, 1
    %p62 = scmp.eq.s32.totalorder %s10, 1
    %p63 = scmp.ne.s32.totalorder %s58, %s60
    %p64 = scmp.eq.s32.totalorder %s10, 0
    %p65 = por %p63, %p64
    %p66 = scmp.ne.s32.totalorder %s58, %s60
    %p67 = scmp.eq.s32.totalorder %s15, 1
    %p68 = por %p66, %p67
    %p69 = scmp.ne.s32.totalorder %s60, %s61
    %p70 = scmp.eq.s32.totalorder %s15, 0
    %p71 = por %p69, %p70
    %p72 = scmp.ne.s32.totalorder %s60, %s61
    %p73 = scmp.eq.s32.totalorder %s16, 1
    %p74 = por %p72, %p73
    %p76 = scmp.ne.s32.totalorder %s61, %s75
    %p77 = scmp.eq.s32.totalorder %s16, 0
    %p78 = por %p76, %p77
    %s79 = ssub.s32 %s17, %s29
    %s80 = ssub.s32 %s18, %s25
    %s81 = sor.u32 %s79, %s80
    %p82 = scmp.eq.s32.totalorder %s81, 0
    %s84 = sadd.s32 %s83, 1
    %s85 = scalar_select %p82, %s83, %s84
    %p88 = pneg %p82
    %p89 = scmp.eq.s32.totalorder %s10, 1
    %p90 = por %p88, %p89
    %p91 = scmp.ne.s32.totalorder %s83, %s86
    %p92 = scmp.eq.s32.totalorder %s10, 0
    %p93 = por %p91, %p92
    %p94 = scmp.ne.s32.totalorder %s83, %s86
    %p95 = scmp.eq.s32.totalorder %s15, 1
    %p96 = por %p94, %p95
    %p97 = scmp.ne.s32.totalorder %s86, %s87
    %p98 = scmp.eq.s32.totalorder %s15, 0
    %p99 = por %p97, %p98
    %p100 = scmp.ne.s32.totalorder %s86, %s87
    %p101 = scmp.eq.s32.totalorder %s16, 1
    %p102 = por %p100, %p101
    %p104 = scmp.ne.s32.totalorder %s87, %s103
    %p105 = scmp.eq.s32.totalorder %s16, 0
    %p106 = por %p104, %p105
    %s107 = ssub.s32 %s17, %s29
    %s108 = ssub.s32 %s18, %s25
    %s109 = sor.u32 %s107, %s108
    %p110 = scmp.eq.s32.totalorder %s109, 0
    %s112 = sadd.s32 %s111, 1
    %s113 = scalar_select %p110, %s111, %s112
    %p116 = pneg %p110
    %p117 = scmp.eq.s32.totalorder %s10, 1
    %p118 = por %p116, %p117
    %p119 = scmp.ne.s32.totalorder %s111, %s114
    %p120 = scmp.eq.s32.totalorder %s10, 0
    %p121 = por %p119, %p120
    %p122 = scmp.ne.s32.totalorder %s111, %s114
    %p123 = scmp.eq.s32.totalorder %s15, 1
    %p124 = por %p122, %p123
    %p125 = scmp.ne.s32.totalorder %s114, %s115
    %p126 = scmp.eq.s32.totalorder %s15, 0
    %p127 = por %p125, %p126
    %p128 = scmp.ne.s32.totalorder %s114, %s115
    %p129 = scmp.eq.s32.totalorder %s16, 1
    %p130 = por %p128, %p129
    %p132 = scmp.ne.s32.totalorder %s115, %s131
    %p133 = scmp.eq.s32.totalorder %s16, 0
    %p134 = por %p132, %p133
    %p135 = scmp.le.s32.totalorder 1, %s10
    %p136 = scmp.lt.s32.totalorder %s10, 3
    %p137 = pnand %p135, %p136
    %p138 = pneg %p137
    // Predicated region
    $region9: #{quantizer_forward.1} parent=5 // pred_check
      _
    $region10: #{quantizer_forward.1} parent=5 // pred_check_branch
      %140 = sbr.rel (%p137) target = $region12
    $region11: #{quantizer_forward.1} parent=5 // pred_region
      %s141 = ssub.s32 %s10, 1
      // Predicated region
      $region13: #{quantizer_forward.1} parent=11 // pred_check
        %p142 = pneg %p71
      $region14: #{quantizer_forward.1} parent=11 // pred_check_branch
        %144 = sbr.rel (%p142) target = $region16
      $region15: #{quantizer_forward.1} parent=11 // pred_region
        _
      $region16: #{quantizer_forward.1} parent=11 // pred_fallthru
        _
    $region12: #{quantizer_forward.1} parent=5 // pred_fallthru
      _
    %p145 = scmp.lt.s32.totalorder %s10, 2
    // Predicated region
    $region17: #{quantizer_forward.1} parent=5 // pred_check
      %p146 = pneg %p145
    $region18: #{quantizer_forward.1} parent=5 // pred_check_branch
      %148 = sbr.rel (%p146) target = $region20
    $region19: #{quantizer_forward.1} parent=5 // pred_region
      // Predicated region
      $region21: #{quantizer_forward.1} parent=19 // pred_check
        %p149 = pneg %p44
      $region22: #{quantizer_forward.1} parent=19 // pred_check_branch
        %151 = sbr.rel (%p149) target = $region24
      $region23: #{quantizer_forward.1} parent=19 // pred_region
        %s152 = smul.u32 2, %s18
        %p153 = scmp.lt.s32.totalorder %s17, 1
        %s154 = scalar_select %p153, %s17, 1
        %p155 = scmp.lt.s32.totalorder %s152, 1
        %s156 = scalar_select %p155, %s152, 1
        %s157 = smul.addr %s154, 2
        %s158 = sadd.s32 %s156, %s157
        %s159 = smul.addr %s158, 4
        %s160 = scalar_lea.vmem %s0, %s159
        %s161 = smul.u32 2, %s18
      $region24: #{quantizer_forward.1} parent=19 // pred_fallthru
        _
    $region20: #{quantizer_forward.1} parent=5 // pred_fallthru
      _
    %p162 = scmp.le.s32.totalorder 1, %s10
    %p163 = scmp.lt.s32.totalorder %s10, 3
    %p164 = pnand %p162, %p163
    %p165 = pneg %p164
    // Predicated region
    $region25: #{quantizer_forward.1} parent=5 // pred_check
      _
    $region26: #{quantizer_forward.1} parent=5 // pred_check_branch
      %167 = sbr.rel (%p164) target = $region28
    $region27: #{quantizer_forward.1} parent=5 // pred_region
      %s168 = ssub.s32 %s10, 1
      %s169 = smul.u32 2, %s20
      %p170 = scmp.lt.s32.totalorder %s19, 1
      %s171 = scalar_select %p170, %s19, 1
      %p172 = scmp.lt.s32.totalorder %s169, 1
      %s173 = scalar_select %p172, %s169, 1
      %s174 = smul.addr %s171, 2
      %s175 = sadd.s32 %s173, %s174
      %s176 = smul.addr %s175, 4
      %s177 = scalar_lea.vmem %s0, %s176
      %p178 = pneg %p50
      %p179 = pneg %p47
      %p180 = pneg %p71
      %p181 = pneg %p68
      %p182 = pneg %p99
      %p183 = pneg %p96
      %s184 = smul.u32 2, %s20
      %p185 = scmp.lt.s32.totalorder %s19, 1
      %s186 = scalar_select %p185, %s19, 1
      %p187 = scmp.lt.s32.totalorder %s184, 1
      %s188 = scalar_select %p187, %s184, 1
      %s189 = smul.addr %s186, 2
      %s190 = sadd.s32 %s188, %s189
      %s191 = smul.addr %s190, 4
      %s192 = scalar_lea.vmem %s2, %s191
      %p193 = pneg %p127
      %p194 = pneg %p124
      %p195 = scmp.lt.s32.totalorder %s19, 1
      %s196 = scalar_select %p195, %s19, 1
      %p197 = scmp.lt.s32.totalorder %s20, 0
      %s198 = scalar_select %p197, %s20, 0
      %s199 = sadd.s32 %s198, %s196
      %s200 = smul.addr %s199, 8
      %s201 = scalar_lea.vmem %s3, %s200
      %s202 = smul.u32 2, %s20
      %p203 = scmp.lt.s32.totalorder %s19, 1
      %s204 = scalar_select %p203, %s19, 1
      %p205 = scmp.lt.s32.totalorder %s202, 1
      %s206 = scalar_select %p205, %s202, 1
      %s207 = smul.addr %s204, 2
      %s208 = sadd.s32 %s206, %s207
      %s209 = smul.addr %s208, 4
      %s210 = scalar_lea.vmem %s0, %s209
      %s211 = smul.u32 2, %s20
      %s212 = smul.u32 2, %s20
      %p213 = scmp.lt.s32.totalorder %s19, 1
      %s214 = scalar_select %p213, %s19, 1
      %p215 = scmp.lt.s32.totalorder %s212, 1
      %s216 = scalar_select %p215, %s212, 1
      %s217 = smul.addr %s214, 2
      %s218 = sadd.s32 %s216, %s217
      %s219 = smul.addr %s218, 4
      %s220 = scalar_lea.vmem %s2, %s219
      %s221 = smul.u32 2, %s20
      %p222 = scmp.lt.s32.totalorder %s19, 1
      %s223 = scalar_select %p222, %s19, 1
      %p224 = scmp.lt.s32.totalorder %s20, 0
      %s225 = scalar_select %p224, %s20, 0
      %s226 = sadd.s32 %s225, %s223
      %s227 = smul.addr %s226, 8
      %s228 = scalar_lea.vmem %s3, %s227
      %v229 = vld [vmem:[%s210] sm:$0xff]
      %v230 = vld [vmem:[%s1] sm:$0xf]
      %232 = vset.pattern.permute.xlu0 0
      %233 = vperm.xlu0 %232, %v230
      %v234 = vpop.permute.xlu0 %233
      %v237 = vunpack.c.l.s4 839922192
      %v238 = vunpack.c.0.s8 %v237
      %v239 = vlaneseq
      %v240 = vshrl.u32 %v239, 7
      %v241 = vsub.s32 %v238, %v240
      %v242 = vrot.slane %v234, %v241
      %v244 = vsub.f32 %v229, %v242
      %v245 = vmul.f32 %v244, %v244
      %v247 = vcombine.high %v245, %v245
      %vm249 = vcmask 1043456
      %v250 = vsel %vm249, %v245, 0.0
      %v251 = vrot.slane %v250, 4
      %v252 = vadd.f32 %v250, %v251
      %v253 = vrot.slane %v252, 2
      %v254 = vadd.f32 %v252, %v253
      %v255 = vrot.slane %v254, 1
      %v256 = vadd.f32 %v254, %v255
      %v257 = vsel %vm249, %v247, 0.0
      %v258 = vrot.slane %v257, 4
      %v259 = vadd.f32 %v257, %v258
      %v260 = vrot.slane %v259, 2
      %v261 = vadd.f32 %v259, %v260
      %v262 = vrot.slane %v261, 1
      %v263 = vadd.f32 %v261, %v262
      %264 = vset.pattern.permute.xlu0 1
      %265 = vperm.xlu0 %264, %v230
      %v266 = vpop.permute.xlu0 %265
      %v269 = vunpack.c.l.s4 839922192
      %v270 = vunpack.c.0.s8 %v269
      %v271 = vlaneseq
      %v272 = vshrl.u32 %v271, 7
      %v273 = vsub.s32 %v270, %v272
      %v274 = vrot.slane %v266, %v273
      %v276 = vsub.f32 %v229, %v274
      %v277 = vmul.f32 %v276, %v276
      %v279 = vcombine.high %v277, %v277
      %v281 = vsel %vm249, %v277, 0.0
      %v282 = vrot.slane %v281, 4
      %v283 = vadd.f32 %v281, %v282
      %v284 = vrot.slane %v283, 2
      %v285 = vadd.f32 %v283, %v284
      %v286 = vrot.slane %v285, 1
      %v287 = vadd.f32 %v285, %v286
      %v288 = vsel %vm249, %v279, 0.0
      %v289 = vrot.slane %v288, 4
      %v290 = vadd.f32 %v288, %v289
      %v291 = vrot.slane %v290, 2
      %v292 = vadd.f32 %v290, %v291
      %v293 = vrot.slane %v292, 1
      %v294 = vadd.f32 %v292, %v293
      %vm295 = vcmp.lt.f32.partialorder %v287, %v256
      %vm296 = vcmp.lt.f32.partialorder %v294, %v263
      %v297 = vsel %vm295, %v287, %v256
      %v298 = vsel %vm296, %v294, %v263
      %v299 = vsel %vm295, 1, 0
      %v300 = vsel %vm296, 1, 0
      %vm301 = vcmp.eq.s32.totalorder %v299, 1
      %vm302 = vcmp.eq.s32.totalorder %v300, 1
      %v303 = vsel %vm301, %v266, %v234
      %v304 = vsel %vm302, %v266, %v234
      %305 = vset.pattern.permute.xlu0 2
      %306 = vperm.xlu0 %305, %v230
      %v307 = vpop.permute.xlu0 %306
      %v310 = vunpack.c.l.s4 839922192
      %v311 = vunpack.c.0.s8 %v310
      %v312 = vlaneseq
      %v313 = vshrl.u32 %v312, 7
      %v314 = vsub.s32 %v311, %v313
      %v315 = vrot.slane %v307, %v314
      %v317 = vsub.f32 %v229, %v315
      %v318 = vmul.f32 %v317, %v317
      %v320 = vcombine.high %v318, %v318
      %v322 = vsel %vm249, %v318, 0.0
      %v323 = vrot.slane %v322, 4
      %v324 = vadd.f32 %v322, %v323
      %v325 = vrot.slane %v324, 2
      %v326 = vadd.f32 %v324, %v325
      %v327 = vrot.slane %v326, 1
      %v328 = vadd.f32 %v326, %v327
      %v329 = vsel %vm249, %v320, 0.0
      %v330 = vrot.slane %v329, 4
      %v331 = vadd.f32 %v329, %v330
      %v332 = vrot.slane %v331, 2
      %v333 = vadd.f32 %v331, %v332
      %v334 = vrot.slane %v333, 1
      %v335 = vadd.f32 %v333, %v334
      %vm336 = vcmp.lt.f32.partialorder %v328, %v297
      %vm337 = vcmp.lt.f32.partialorder %v335, %v298
      %v338 = vsel %vm336, %v328, %v297
      %v339 = vsel %vm337, %v335, %v298
      %v340 = vsel %vm336, 1, 0
      %v341 = vsel %vm337, 1, 0
      %vm342 = vcmp.eq.s32.totalorder %v340, 1
      %vm343 = vcmp.eq.s32.totalorder %v341, 1
      %v344 = vsel %vm342, %v307, %v303
      %v345 = vsel %vm343, %v307, %v304
      %346 = vset.pattern.permute.xlu0 3
      %347 = vperm.xlu0 %346, %v230
      %v348 = vpop.permute.xlu0 %347
      %v351 = vunpack.c.l.s4 839922192
      %v352 = vunpack.c.0.s8 %v351
      %v353 = vlaneseq
      %v354 = vshrl.u32 %v353, 7
      %v355 = vsub.s32 %v352, %v354
      %v356 = vrot.slane %v348, %v355
      %v358 = vsub.f32 %v229, %v356
      %v359 = vmul.f32 %v358, %v358
      %v361 = vcombine.high %v359, %v359
      %v363 = vsel %vm249, %v359, 0.0
      %v364 = vrot.slane %v363, 4
      %v365 = vadd.f32 %v363, %v364
      %v366 = vrot.slane %v365, 2
      %v367 = vadd.f32 %v365, %v366
      %v368 = vrot.slane %v367, 1
      %v369 = vadd.f32 %v367, %v368
      %v370 = vsel %vm249, %v361, 0.0
      %v371 = vrot.slane %v370, 4
      %v372 = vadd.f32 %v370, %v371
      %v373 = vrot.slane %v372, 2
      %v374 = vadd.f32 %v372, %v373
      %v375 = vrot.slane %v374, 1
      %v376 = vadd.f32 %v374, %v375
      %vm377 = vcmp.lt.f32.partialorder %v369, %v338
      %vm378 = vcmp.lt.f32.partialorder %v376, %v339
      %v379 = vsel %vm377, %v369, %v338
      %v380 = vsel %vm378, %v376, %v339
      %v381 = vsel %vm377, 1, 0
      %v382 = vsel %vm378, 1, 0
      %vm383 = vcmp.eq.s32.totalorder %v381, 1
      %vm384 = vcmp.eq.s32.totalorder %v382, 1
      %v385 = vsel %vm383, %v348, %v344
      %v386 = vsel %vm384, %v348, %v345
      %387 = vset.pattern.permute.xlu0 4
      %388 = vperm.xlu0 %387, %v230
      %v389 = vpop.permute.xlu0 %388
      %v392 = vunpack.c.l.s4 839922192
      %v393 = vunpack.c.0.s8 %v392
      %v394 = vlaneseq
      %v395 = vshrl.u32 %v394, 7
      %v396 = vsub.s32 %v393, %v395
      %v397 = vrot.slane %v389, %v396
      %v399 = vsub.f32 %v229, %v397
      %v400 = vmul.f32 %v399, %v399
      %v402 = vcombine.high %v400, %v400
      %v404 = vsel %vm249, %v400, 0.0
      %v405 = vrot.slane %v404, 4
      %v406 = vadd.f32 %v404, %v405
      %v407 = vrot.slane %v406, 2
      %v408 = vadd.f32 %v406, %v407
      %v409 = vrot.slane %v408, 1
      %v410 = vadd.f32 %v408, %v409
      %v411 = vsel %vm249, %v402, 0.0
      %v412 = vrot.slane %v411, 4
      %v413 = vadd.f32 %v411, %v412
      %v414 = vrot.slane %v413, 2
      %v415 = vadd.f32 %v413, %v414
      %v416 = vrot.slane %v415, 1
      %v417 = vadd.f32 %v415, %v416
      %vm418 = vcmp.lt.f32.partialorder %v410, %v379
      %vm419 = vcmp.lt.f32.partialorder %v417, %v380
      %v420 = vsel %vm418, %v410, %v379
      %v421 = vsel %vm419, %v417, %v380
      %v422 = vsel %vm418, 1, 0
      %v423 = vsel %vm419, 1, 0
      %vm424 = vcmp.eq.s32.totalorder %v422, 1
      %vm425 = vcmp.eq.s32.totalorder %v423, 1
      %v426 = vsel %vm424, %v389, %v385
      %v427 = vsel %vm425, %v389, %v386
      %428 = vset.pattern.permute.xlu0 5
      %429 = vperm.xlu0 %428, %v230
      %v430 = vpop.permute.xlu0 %429
      %v433 = vunpack.c.l.s4 839922192
      %v434 = vunpack.c.0.s8 %v433
      %v435 = vlaneseq
      %v436 = vshrl.u32 %v435, 7
      %v437 = vsub.s32 %v434, %v436
      %v438 = vrot.slane %v430, %v437
      %v440 = vsub.f32 %v229, %v438
      %v441 = vmul.f32 %v440, %v440
      %v443 = vcombine.high %v441, %v441
      %v445 = vsel %vm249, %v441, 0.0
      %v446 = vrot.slane %v445, 4
      %v447 = vadd.f32 %v445, %v446
      %v448 = vrot.slane %v447, 2
      %v449 = vadd.f32 %v447, %v448
      %v450 = vrot.slane %v449, 1
      %v451 = vadd.f32 %v449, %v450
      %v452 = vsel %vm249, %v443, 0.0
      %v453 = vrot.slane %v452, 4
      %v454 = vadd.f32 %v452, %v453
      %v455 = vrot.slane %v454, 2
      %v456 = vadd.f32 %v454, %v455
      %v457 = vrot.slane %v456, 1
      %v458 = vadd.f32 %v456, %v457
      %vm459 = vcmp.lt.f32.partialorder %v451, %v420
      %vm460 = vcmp.lt.f32.partialorder %v458, %v421
      %v461 = vsel %vm459, %v451, %v420
      %v462 = vsel %vm460, %v458, %v421
      %v463 = vsel %vm459, 1, 0
      %v464 = vsel %vm460, 1, 0
      %vm465 = vcmp.eq.s32.totalorder %v463, 1
      %vm466 = vcmp.eq.s32.totalorder %v464, 1
      %v467 = vsel %vm465, %v430, %v426
      %v468 = vsel %vm466, %v430, %v427
      %469 = vset.pattern.permute.xlu0 6
      %470 = vperm.xlu0 %469, %v230
      %v471 = vpop.permute.xlu0 %470
      %v474 = vunpack.c.l.s4 839922192
      %v475 = vunpack.c.0.s8 %v474
      %v476 = vlaneseq
      %v477 = vshrl.u32 %v476, 7
      %v478 = vsub.s32 %v475, %v477
      %v479 = vrot.slane %v471, %v478
      %v481 = vsub.f32 %v229, %v479
      %v482 = vmul.f32 %v481, %v481
      %v484 = vcombine.high %v482, %v482
      %v486 = vsel %vm249, %v482, 0.0
      %v487 = vrot.slane %v486, 4
      %v488 = vadd.f32 %v486, %v487
      %v489 = vrot.slane %v488, 2
      %v490 = vadd.f32 %v488, %v489
      %v491 = vrot.slane %v490, 1
      %v492 = vadd.f32 %v490, %v491
      %v493 = vsel %vm249, %v484, 0.0
      %v494 = vrot.slane %v493, 4
      %v495 = vadd.f32 %v493, %v494
      %v496 = vrot.slane %v495, 2
      %v497 = vadd.f32 %v495, %v496
      %v498 = vrot.slane %v497, 1
      %v499 = vadd.f32 %v497, %v498
      %vm500 = vcmp.lt.f32.partialorder %v492, %v461
      %vm501 = vcmp.lt.f32.partialorder %v499, %v462
      %v502 = vsel %vm500, %v492, %v461
      %v503 = vsel %vm501, %v499, %v462
      %v504 = vsel %vm500, 1, 0
      %v505 = vsel %vm501, 1, 0
      %vm506 = vcmp.eq.s32.totalorder %v504, 1
      %vm507 = vcmp.eq.s32.totalorder %v505, 1
      %v508 = vsel %vm506, %v471, %v467
      %v509 = vsel %vm507, %v471, %v468
      %510 = vset.pattern.permute.xlu0 7
      %511 = vperm.xlu0 %510, %v230
      %v512 = vpop.permute.xlu0 %511
      %v515 = vunpack.c.l.s4 839922192
      %v516 = vunpack.c.0.s8 %v515
      %v517 = vlaneseq
      %v518 = vshrl.u32 %v517, 7
      %v519 = vsub.s32 %v516, %v518
      %v520 = vrot.slane %v512, %v519
      %v522 = vsub.f32 %v229, %v520
      %v523 = vmul.f32 %v522, %v522
      %v525 = vcombine.high %v523, %v523
      %v527 = vsel %vm249, %v523, 0.0
      %v528 = vrot.slane %v527, 4
      %v529 = vadd.f32 %v527, %v528
      %v530 = vrot.slane %v529, 2
      %v531 = vadd.f32 %v529, %v530
      %v532 = vrot.slane %v531, 1
      %v533 = vadd.f32 %v531, %v532
      %v534 = vsel %vm249, %v525, 0.0
      %v535 = vrot.slane %v534, 4
      %v536 = vadd.f32 %v534, %v535
      %v537 = vrot.slane %v536, 2
      %v538 = vadd.f32 %v536, %v537
      %v539 = vrot.slane %v538, 1
      %v540 = vadd.f32 %v538, %v539
      %vm541 = vcmp.lt.f32.partialorder %v533, %v502
      %vm542 = vcmp.lt.f32.partialorder %v540, %v503
      %v543 = vsel %vm541, 1, 0
      %v544 = vsel %vm542, 1, 0
      %vm545 = vcmp.eq.s32.totalorder %v543, 1
      %vm546 = vcmp.eq.s32.totalorder %v544, 1
      %v547 = vsel %vm545, %v512, %v508
      %v548 = vsel %vm546, %v512, %v509
      %v551 = vcombine.low %v547, %v548
      %553 = vst [vmem:[%s220] sm:$0xff] %v551
      %v554 = vlaneseq
      %v555 = vand.u32 %v554, 127
      %v556 = vadd.s32 %v555, 128
      %s557 = smul.u32 %s20, 256
      %v558 = vstv %s557
      %v559 = vadd.s32 %v558, %v555
      %v560 = vadd.s32 %v558, %v556
      %vm561 = vcmp.lt.s32.totalorder %v559, 256
      %vm562 = vcmp.lt.s32.totalorder %v560, 256
      %v563 = vsub.f32 %v229, %v551
      %v564 = vsel %vm561, 1, 0
      %v565 = vsel %vm562, 1, 0
      %vm566 = vcmp.eq.s32.totalorder %v564, 1
      %vm567 = vcmp.eq.s32.totalorder %v565, 1
      %v569 = vcombine.high %v563, %v563
      %v571 = vsel %vm566, %v563, 0.0
      %v572 = vsel %vm567, %v569, 0.0
      %v573 = vmul.f32 %v571, %v571
      %v574 = vmul.f32 %v572, %v572
      %v575 = vsel %vm249, %v573, 0.0
      %v576 = vsel %vm249, %v574, 0.0
      %v577 = vadd.f32 %v575, %v576
      %578 = vadd.xlane.f32.xlu0 %v577
      %v579 = vpop.xlane.xlu0 %578
      %v580 = vrot.slane %v579, 4
      %v581 = vadd.f32 %v579, %v580
      %v582 = vrot.slane %v581, 2
      %v583 = vadd.f32 %v581, %v582
      %v584 = vrot.slane %v583, 1
      %v585 = vadd.f32 %v583, %v584
      %s586 = vtos %v585
      %v587 = vstv %s586
      %588 = vst [vmem:[%s228] sm:$0xff] %v587
      %s589 = smul.u32 2, %s20
      %p590 = scmp.lt.s32.totalorder %s19, 1
      %s591 = scalar_select %p590, %s19, 1
      %p592 = scmp.lt.s32.totalorder %s589, 1
      %s593 = scalar_select %p592, %s589, 1
      %s594 = smul.addr %s591, 2
      %s595 = sadd.s32 %s593, %s594
      %s596 = smul.addr %s595, 4
      %s597 = scalar_lea.vmem %s2, %s596
      %p598 = scmp.lt.s32.totalorder %s19, 1
      %s599 = scalar_select %p598, %s19, 1
      %p600 = scmp.lt.s32.totalorder %s20, 0
      %s601 = scalar_select %p600, %s20, 0
      %s602 = sadd.s32 %s601, %s599
      %s603 = smul.addr %s602, 8
      %s604 = scalar_lea.vmem %s3, %s603
      // Predicated region
      $region29: #{quantizer_forward.1} parent=27 // pred_check
        %p605 = pneg %p96
      $region30: #{quantizer_forward.1} parent=27 // pred_check_branch
        %607 = sbr.rel (%p605) target = $region32
      $region31: #{quantizer_forward.1} parent=27 // pred_region
        %s608 = smul.u32 2, %s20
      $region32: #{quantizer_forward.1} parent=27 // pred_fallthru
        _
      // Predicated region
      $region33: #{quantizer_forward.1} parent=27 // pred_check
        %p609 = pneg %p124
      $region34: #{quantizer_forward.1} parent=27 // pred_check_branch
        %611 = sbr.rel (%p609) target = $region36
      $region35: #{quantizer_forward.1} parent=27 // pred_region
        _
      $region36: #{quantizer_forward.1} parent=27 // pred_fallthru
        _
    $region28: #{quantizer_forward.1} parent=5 // pred_fallthru
      _
    %p612 = scmp.le.s32.totalorder 2, %s10
    // Predicated region
    $region37: #{quantizer_forward.1} parent=5 // pred_check
      %p613 = pneg %p612
    $region38: #{quantizer_forward.1} parent=5 // pred_check_branch
      %615 = sbr.rel (%p613) target = $region40
    $region39: #{quantizer_forward.1} parent=5 // pred_region
      %s616 = ssub.s32 %s10, 2
      // Predicated region
      $region41: #{quantizer_forward.1} parent=39 // pred_check
        %p617 = pneg %p102
      $region42: #{quantizer_forward.1} parent=39 // pred_check_branch
        %619 = sbr.rel (%p617) target = $region44
      $region43: #{quantizer_forward.1} parent=39 // pred_region
        %s620 = smul.u32 2, %s22
        %p621 = scmp.lt.s32.totalorder %s21, 1
        %s622 = scalar_select %p621, %s21, 1
        %p623 = scmp.lt.s32.totalorder %s620, 1
        %s624 = scalar_select %p623, %s620, 1
        %s625 = smul.addr %s622, 2
        %s626 = sadd.s32 %s624, %s625
        %s627 = smul.addr %s626, 4
        %s628 = scalar_lea.vmem %s2, %s627
      $region44: #{quantizer_forward.1} parent=39 // pred_fallthru
        _
      // Predicated region
      $region45: #{quantizer_forward.1} parent=39 // pred_check
        %p629 = pneg %p130
      $region46: #{quantizer_forward.1} parent=39 // pred_check_branch
        %631 = sbr.rel (%p629) target = $region48
      $region47: #{quantizer_forward.1} parent=39 // pred_region
        %p632 = scmp.lt.s32.totalorder %s21, 1
        %s633 = scalar_select %p632, %s21, 1
        %p634 = scmp.lt.s32.totalorder %s22, 0
        %s635 = scalar_select %p634, %s22, 0
        %s636 = sadd.s32 %s635, %s633
        %s637 = smul.addr %s636, 8
        %s638 = scalar_lea.vmem %s3, %s637
      $region48: #{quantizer_forward.1} parent=39 // pred_fallthru
        _
    $region40: #{quantizer_forward.1} parent=5 // pred_fallthru
      _
  $region6: #{quantizer_forward.1} parent=0 // loop_footer
    %s14 = sadd.s32 1, %s10
  $region7: #{quantizer_forward.1} parent=0 // loop_footer_branch
    %9 = sbr.rel target = $region3
  $region8: #{quantizer_forward.1} parent=0 // loop_exit
    _

</llo_original>
